<compile_context>
chip_gen: v6e
topology: v6e:2x2x1
jax: 0.10.0
libtpu: 0.0.40
codegen_flags: <defaults>
</compile_context>

<pallas_src>
import functools

import jax
import jax.numpy as jnp
import numpy as np
from jax import lax
from jax.experimental import pallas as pl
from jax.experimental.pallas import tpu as pltpu

LEAK = 0.2


def _leaky(v):
    # LeakyReLU(0.2) == max(v, 0.2 * v) for leak < 1.
    return jnp.maximum(v, LEAK * v)


# --------------------------------------------------------------------------
# One fire block: squeeze activation s (S, HW) f32 -> fire output (2E, HW) f32
# via a single combined expand matmul.  Taps are written into the persistent
# f32 patch scratch (9S, HW); masks are 0/1 f32 already shaped (S, HW).
# --------------------------------------------------------------------------
def _fire(s, wcomb_ref, bcomb, cl, cr, rt, rb, patch_ref, W):
    S, HW = s.shape
    # dy == 0 column variants: t_dx[p] = s[p + dx], zeroed where the shifted
    # column falls outside the image row.
    cols = (
        pltpu.roll(s, 1, axis=1) * cl,        # dx = -1
        s,                                    # dx =  0  (no mask)
        pltpu.roll(s, HW - 1, axis=1) * cr,   # dx = +1
    )
    # Write the 9 taps straight into the scratch.  Tap index k = (dy+1)*3 +
    # (dx+1) matches the (E, ky, kx, S) flattening of the expand3x3 weight.
    for j, t in enumerate(cols):
        patch_ref[j * S:(j + 1) * S, :] = pltpu.roll(t, W, axis=1) * rt          # dy = -1
        patch_ref[(3 + j) * S:(4 + j) * S, :] = t                                # dy =  0
        patch_ref[(6 + j) * S:(7 + j) * S, :] = pltpu.roll(t, HW - W, axis=1) * rb  # dy = +1

    # Single fused matmul: rows 0..E of W_comb = expand1x1 (center-tap column
    # block only), rows E..2E = expand3x3 -> no channel concat needed.
    out = jnp.dot(wcomb_ref[...], patch_ref[...].astype(jnp.bfloat16),
                  preferred_element_type=jnp.float32) + bcomb
    return _leaky(out)                        # (2E, HW) f32


def upsample_kernel(x_ref, wsq1_ref, wsq2_ref, wcomb_ref, bias_ref, mask_ref,
                    o_ref, patch_ref, *, H, W, S, E):
    del H
    # Host-precomputed 0/1 masks, already replicated to S rows -> plain
    # aligned (S, HW) loads, no broadcast_in_dim re-emission per tap.
    rt = mask_ref[0 * S:1 * S, :]   # rows where dy = -1 tap is valid
    rb = mask_ref[1 * S:2 * S, :]   # rows where dy = +1 tap is valid
    cl = mask_ref[2 * S:3 * S, :]   # cols where dx = -1 tap is valid
    cr = mask_ref[3 * S:4 * S, :]   # cols where dx = +1 tap is valid

    bsq1 = bias_ref[0:S, :]
    bsq2 = bias_ref[S:2 * S, :]
    bcomb = bias_ref[2 * S:2 * S + 2 * E, :]

    # fire 1
    s1 = _leaky(jnp.dot(wsq1_ref[...], x_ref[...].astype(jnp.bfloat16),
                        preferred_element_type=jnp.float32) + bsq1)
    c1 = _fire(s1, wcomb_ref, bcomb, cl, cr, rt, rb, patch_ref, W)

    # fire 2 (shares the expand weights and the patch scratch, as in the module)
    s2 = _leaky(jnp.dot(wsq2_ref[...], c1.astype(jnp.bfloat16),
                        preferred_element_type=jnp.float32) + bsq2)
    c2 = _fire(s2, wcomb_ref, bcomb, cl, cr, rt, rb, patch_ref, W)

    o_ref[...] = c2.astype(o_ref.dtype)


# --------------------------------------------------------------------------
# Wrapper: NCHW in, NCHW out (reshape only — no transposes, no HBM glue).
# --------------------------------------------------------------------------
@jax.jit
def upsample_forward(x_nchw, p):
    N, Cin, H, W = x_nchw.shape
    S = p["wsq1"].shape[0]
    E = p["we1"].shape[0]
    HW = H * W

    x_flat = x_nchw.reshape(N, Cin, HW)                      # free reshape

    bf = jnp.bfloat16
    f32 = jnp.float32
    wsq1 = p["wsq1"].astype(bf)                              # (S, Cin)
    wsq2 = p["wsq2"].astype(bf)                              # (S, 2E)

    # Combined expand weight (2E, 9S): top E rows hold expand1x1 in the
    # center-tap (k=4) column block, bottom E rows hold expand3x3 flattened
    # OIHW -> (E, ky, kx, S) -> (E, 9S), matching the tap order in the patch.
    we3_flat = jnp.transpose(p["we3"], (0, 2, 3, 1)).reshape(E, 9 * S)
    we1_pad = jnp.zeros((E, 9 * S), f32).at[:, 4 * S:5 * S].set(p["we1"])
    wcomb = jnp.concatenate([we1_pad, we3_flat], axis=0).astype(bf)   # (2E, 9S)

    # All biases packed into one (2S + 2E, 1) f32 operand.
    bias_all = jnp.concatenate(
        [p["bsq1"], p["bsq2"], p["be1"], p["be3"]]).reshape(-1, 1).astype(f32)

    # Border-validity masks, constant across the grid, replicated to S rows
    # per mask so the kernel does aligned (S, HW) loads only.
    xx = jnp.arange(HW, dtype=jnp.int32) % W
    yy = jnp.arange(HW, dtype=jnp.int32) // W
    mask_rows = jnp.stack([
        yy >= 1,            # dy = -1 valid
        yy <= H - 2,        # dy = +1 valid
        xx >= 1,            # dx = -1 valid
        xx <= W - 2,        # dx = +1 valid
    ]).astype(f32)                                           # (4, HW)
    masks = jnp.repeat(mask_rows, S, axis=0)                 # (4S, HW)

    kernel = functools.partial(upsample_kernel, H=H, W=W, S=S, E=E)

    # NOTE: the 4 constant operands (weights/bias/masks) have constant
    # index_maps, so they are fetched once and stay resident in VMEM.
    out = pl.pallas_call(
        kernel,
        out_shape=jax.ShapeDtypeStruct((N, 2 * E, HW), x_nchw.dtype),
        grid_spec=pltpu.PrefetchScalarGridSpec(
            num_scalar_prefetch=0,
            grid=(N,),
            in_specs=[
                pl.BlockSpec((None, Cin, HW), lambda n: (n, 0, 0)),    # x
                pl.BlockSpec((S, Cin), lambda n: (0, 0)),              # wsq1
                pl.BlockSpec((S, 2 * E), lambda n: (0, 0)),            # wsq2
                pl.BlockSpec((2 * E, 9 * S), lambda n: (0, 0)),        # wcomb
                pl.BlockSpec((2 * S + 2 * E, 1), lambda n: (0, 0)),    # biases
                pl.BlockSpec((4 * S, HW), lambda n: (0, 0)),           # masks
            ],
            out_specs=pl.BlockSpec((None, 2 * E, HW), lambda n: (n, 0, 0)),
            scratch_shapes=[pltpu.VMEM((9 * S, HW), jnp.float32)],     # patch
        ),
        compiler_params=pltpu.CompilerParams(
            dimension_semantics=("parallel",),   # batch across TCs on v7x
            vmem_limit_bytes=64 * 1024 * 1024,
        ),
    )(x_flat, wsq1, wsq2, wcomb, bias_all, masks)

    return out.reshape(N, 2 * E, H, W)                       # free reshape


# --------------------------------------------------------------------------
# Deterministic parameter init (PyTorch-style layouts; the expand weights are
# shared between both fire applications, exactly as in the nn.Module).
# --------------------------------------------------------------------------
def init_params(key, inplanes, s_plane, e_plane):
    ks = jax.random.split(key, 8)

    def u(k, shape, fan_in):
        b = 1.0 / np.sqrt(fan_in)
        return jax.random.uniform(k, shape, jnp.float32, -b, b)

    return {
        "wsq1": u(ks[0], (s_plane, inplanes), inplanes),            # OI
        "bsq1": u(ks[1], (s_plane,), inplanes),
        "wsq2": u(ks[2], (s_plane, 2 * e_plane), 2 * e_plane),      # OI
        "bsq2": u(ks[3], (s_plane,), 2 * e_plane),
        "we1": u(ks[4], (e_plane, s_plane), s_plane),               # OI
        "be1": u(ks[5], (e_plane,), s_plane),
        "we3": u(ks[6], (e_plane, s_plane, 3, 3), 9 * s_plane),     # OIHW
        "be3": u(ks[7], (e_plane,), 9 * s_plane),
    }


# --------------------------------------------------------------------------
# Pure-JAX reference (lax.conv, NCHW) mirroring the kernel's bf16-operand /
# f32-accumulate matmul precision, so a tight tolerance checks kernel logic.
# --------------------------------------------------------------------------
def _conv_ref(x, w_oihw, b, padding):
    y = lax.conv_general_dilated(
        x.astype(jnp.bfloat16), w_oihw.astype(jnp.bfloat16), (1, 1), padding,
        dimension_numbers=("NCHW", "OIHW", "NCHW"),
        preferred_element_type=jnp.float32)
    return y + b.reshape(1, -1, 1, 1)


def upsample_ref(x, p):
    def fire(x, wsq, bsq):
        s = _leaky(_conv_ref(x, wsq[:, :, None, None], bsq, "VALID"))
        e1 = _leaky(_conv_ref(s, p["we1"][:, :, None, None], p["be1"], "VALID"))
        e3 = _leaky(_conv_ref(s, p["we3"], p["be3"], ((1, 1), (1, 1))))
        return jnp.concatenate([e1, e3], axis=1)

    c1 = fire(x, p["wsq1"], p["bsq1"])
    return fire(c1, p["wsq2"], p["bsq2"])


if __name__ == "__main__":
    key = jax.random.PRNGKey(0)
    kx, kp = jax.random.split(key)

    N, C, H, W = 2, 4, 16, 16          # batch, inplanes, spatial
    s_plane, e_plane = 8, 8

    x = jax.random.normal(kx, (N, C, H, W), jnp.float32)   # NCHW like PyTorch
    params = init_params(kp, C, s_plane, e_plane)

    out = jax.block_until_ready(upsample_forward(x, params))
    assert out.shape == (N, 2 * e_plane, H, W), out.shape

    ref = jax.block_until_ready(upsample_ref(x, params))
    np.testing.assert_allclose(np.asarray(out), np.asarray(ref),
                               rtol=2e-3, atol=2e-3)
    print("KERNEL_OK")
</pallas_src>

<mosaic_0001>
module attributes {stable_mosaic.version = 11 : i64} {
  func.func @upsample_kernel(%arg0: i32, %arg1: memref<1x4x256xf32, #tpu.memory_space<vmem>>, %arg2: memref<8x4xbf16, #tpu.memory_space<vmem>>, %arg3: memref<8x16xbf16, #tpu.memory_space<vmem>>, %arg4: memref<16x72xbf16, #tpu.memory_space<vmem>>, %arg5: memref<32x1xf32, #tpu.memory_space<vmem>>, %arg6: memref<32x256xf32, #tpu.memory_space<vmem>>, %arg7: memref<1x16x256xf32, #tpu.memory_space<vmem>>, %arg8: memref<72x256xf32, #tpu.memory_space<vmem>>) attributes {dimension_semantics = [#tpu.dimension_semantics<parallel>], iteration_bounds = array<i64: 2>, scalar_prefetch = 0 : i64, scratch_operands = 1 : i64, tpu.core_type = #tpu.core_type<tc>, window_params = [{transform_indices = @transform_0, window_bounds = array<i64: 1, 4, 256>}, {pipeline_mode = #tpu.pipeline_mode<synchronous>, transform_indices = @transform_1, window_bounds = array<i64: 8, 4>}, {pipeline_mode = #tpu.pipeline_mode<synchronous>, transform_indices = @transform_2, window_bounds = array<i64: 8, 16>}, {pipeline_mode = #tpu.pipeline_mode<synchronous>, transform_indices = @transform_3, window_bounds = array<i64: 16, 72>}, {pipeline_mode = #tpu.pipeline_mode<synchronous>, transform_indices = @transform_4, window_bounds = array<i64: 32, 1>}, {pipeline_mode = #tpu.pipeline_mode<synchronous>, transform_indices = @transform_5, window_bounds = array<i64: 32, 256>}, {transform_indices = @transform_6, window_bounds = array<i64: 1, 16, 256>}]} {
    %c0 = arith.constant 0 : index
    %c0_0 = arith.constant 0 : index
    %0 = vector.load %arg6[%c0, %c0_0] : memref<32x256xf32, #tpu.memory_space<vmem>>, vector<8x256xf32>
    %c8 = arith.constant 8 : index
    %c0_1 = arith.constant 0 : index
    %1 = vector.load %arg6[%c8, %c0_1] : memref<32x256xf32, #tpu.memory_space<vmem>>, vector<8x256xf32>
    %c16 = arith.constant 16 : index
    %c0_2 = arith.constant 0 : index
    %2 = vector.load %arg6[%c16, %c0_2] : memref<32x256xf32, #tpu.memory_space<vmem>>, vector<8x256xf32>
    %c24 = arith.constant 24 : index
    %c0_3 = arith.constant 0 : index
    %3 = vector.load %arg6[%c24, %c0_3] : memref<32x256xf32, #tpu.memory_space<vmem>>, vector<8x256xf32>
    %c0_4 = arith.constant 0 : index
    %c0_5 = arith.constant 0 : index
    %4 = vector.load %arg5[%c0_4, %c0_5] : memref<32x1xf32, #tpu.memory_space<vmem>>, vector<8x1xf32>
    %c8_6 = arith.constant 8 : index
    %c0_7 = arith.constant 0 : index
    %5 = vector.load %arg5[%c8_6, %c0_7] : memref<32x1xf32, #tpu.memory_space<vmem>>, vector<8x1xf32>
    %c16_8 = arith.constant 16 : index
    %c0_9 = arith.constant 0 : index
    %6 = vector.load %arg5[%c16_8, %c0_9] : memref<32x1xf32, #tpu.memory_space<vmem>>, vector<16x1xf32>
    %c0_10 = arith.constant 0 : index
    %c0_11 = arith.constant 0 : index
    %7 = vector.load %arg2[%c0_10, %c0_11] : memref<8x4xbf16, #tpu.memory_space<vmem>>, vector<8x4xbf16>
    %c0_12 = arith.constant 0 : index
    %c0_13 = arith.constant 0 : index
    %c0_14 = arith.constant 0 : index
    %8 = vector.load %arg1[%c0_12, %c0_13, %c0_14] : memref<1x4x256xf32, #tpu.memory_space<vmem>>, vector<1x4x256xf32>
    %9 = vector.shape_cast %8 : vector<1x4x256xf32> to vector<4x256xf32>
    %10 = arith.truncf %9 : vector<4x256xf32> to vector<4x256xbf16>
    %cst = arith.constant dense<0.000000e+00> : vector<8x256xf32>
    %11 = tpu.matmul %7, %10, %cst {dimension_numbers = #tpu.dot_dimension_numbers<[1], [0], [0], [1], [0, 0, 1, 1], [], []>} : vector<8x4xbf16>, vector<4x256xbf16>, vector<8x256xf32> -> vector<8x256xf32>
    %12 = vector.broadcast %4 : vector<8x1xf32> to vector<8x256xf32>
    %13 = arith.addf %11, %12 : vector<8x256xf32>
    %cst_15 = arith.constant 2.000000e-01 : f32
    %14 = vector.broadcast %cst_15 : f32 to vector<8x256xf32>
    %15 = arith.mulf %14, %13 : vector<8x256xf32>
    %16 = arith.maximumf %13, %15 : vector<8x256xf32>
    %c1_i32 = arith.constant 1 : i32
    %17 = tpu.dynamic_rotate %16 by %c1_i32 dim 1 : vector<8x256xf32>, i32 -> vector<8x256xf32>
    %18 = arith.mulf %17, %2 : vector<8x256xf32>
    %c255_i32 = arith.constant 255 : i32
    %19 = tpu.dynamic_rotate %16 by %c255_i32 dim 1 : vector<8x256xf32>, i32 -> vector<8x256xf32>
    %20 = arith.mulf %19, %3 : vector<8x256xf32>
    %c16_i32 = arith.constant 16 : i32
    %21 = tpu.dynamic_rotate %18 by %c16_i32 dim 1 : vector<8x256xf32>, i32 -> vector<8x256xf32>
    %22 = arith.mulf %21, %0 : vector<8x256xf32>
    %c0_16 = arith.constant 0 : index
    %c0_17 = arith.constant 0 : index
    %23 = vector.load %arg8[%c0_16, %c0_17] : memref<72x256xf32, #tpu.memory_space<vmem>>, vector<8x256xf32>
    tpu.vector_store %arg8[%c0_16, %c0_17], %22 {strides = array<i32>} : memref<72x256xf32, #tpu.memory_space<vmem>>, vector<8x256xf32>,
    %c24_18 = arith.constant 24 : index
    %c0_19 = arith.constant 0 : index
    %24 = vector.load %arg8[%c24_18, %c0_19] : memref<72x256xf32, #tpu.memory_space<vmem>>, vector<8x256xf32>
    tpu.vector_store %arg8[%c24_18, %c0_19], %18 {strides = array<i32>} : memref<72x256xf32, #tpu.memory_space<vmem>>, vector<8x256xf32>,
    %c240_i32 = arith.constant 240 : i32
    %25 = tpu.dynamic_rotate %18 by %c240_i32 dim 1 : vector<8x256xf32>, i32 -> vector<8x256xf32>
    %26 = arith.mulf %25, %1 : vector<8x256xf32>
    %c48 = arith.constant 48 : index
    %c0_20 = arith.constant 0 : index
    %27 = vector.load %arg8[%c48, %c0_20] : memref<72x256xf32, #tpu.memory_space<vmem>>, vector<8x256xf32>
    tpu.vector_store %arg8[%c48, %c0_20], %26 {strides = array<i32>} : memref<72x256xf32, #tpu.memory_space<vmem>>, vector<8x256xf32>,
    %c16_i32_21 = arith.constant 16 : i32
    %28 = tpu.dynamic_rotate %16 by %c16_i32_21 dim 1 : vector<8x256xf32>, i32 -> vector<8x256xf32>
    %29 = arith.mulf %28, %0 : vector<8x256xf32>
    %c8_22 = arith.constant 8 : index
    %c0_23 = arith.constant 0 : index
    %30 = vector.load %arg8[%c8_22, %c0_23] : memref<72x256xf32, #tpu.memory_space<vmem>>, vector<8x256xf32>
    tpu.vector_store %arg8[%c8_22, %c0_23], %29 {strides = array<i32>} : memref<72x256xf32, #tpu.memory_space<vmem>>, vector<8x256xf32>,
    %c32 = arith.constant 32 : index
    %c0_24 = arith.constant 0 : index
    %31 = vector.load %arg8[%c32, %c0_24] : memref<72x256xf32, #tpu.memory_space<vmem>>, vector<8x256xf32>
    tpu.vector_store %arg8[%c32, %c0_24], %16 {strides = array<i32>} : memref<72x256xf32, #tpu.memory_space<vmem>>, vector<8x256xf32>,
    %c240_i32_25 = arith.constant 240 : i32
    %32 = tpu.dynamic_rotate %16 by %c240_i32_25 dim 1 : vector<8x256xf32>, i32 -> vector<8x256xf32>
    %33 = arith.mulf %32, %1 : vector<8x256xf32>
    %c56 = arith.constant 56 : index
    %c0_26 = arith.constant 0 : index
    %34 = vector.load %arg8[%c56, %c0_26] : memref<72x256xf32, #tpu.memory_space<vmem>>, vector<8x256xf32>
    tpu.vector_store %arg8[%c56, %c0_26], %33 {strides = array<i32>} : memref<72x256xf32, #tpu.memory_space<vmem>>, vector<8x256xf32>,
    %c16_i32_27 = arith.constant 16 : i32
    %35 = tpu.dynamic_rotate %20 by %c16_i32_27 dim 1 : vector<8x256xf32>, i32 -> vector<8x256xf32>
    %36 = arith.mulf %35, %0 : vector<8x256xf32>
    %c16_28 = arith.constant 16 : index
    %c0_29 = arith.constant 0 : index
    %37 = vector.load %arg8[%c16_28, %c0_29] : memref<72x256xf32, #tpu.memory_space<vmem>>, vector<8x256xf32>
    tpu.vector_store %arg8[%c16_28, %c0_29], %36 {strides = array<i32>} : memref<72x256xf32, #tpu.memory_space<vmem>>, vector<8x256xf32>,
    %c40 = arith.constant 40 : index
    %c0_30 = arith.constant 0 : index
    %38 = vector.load %arg8[%c40, %c0_30] : memref<72x256xf32, #tpu.memory_space<vmem>>, vector<8x256xf32>
    tpu.vector_store %arg8[%c40, %c0_30], %20 {strides = array<i32>} : memref<72x256xf32, #tpu.memory_space<vmem>>, vector<8x256xf32>,
    %c240_i32_31 = arith.constant 240 : i32
    %39 = tpu.dynamic_rotate %20 by %c240_i32_31 dim 1 : vector<8x256xf32>, i32 -> vector<8x256xf32>
    %40 = arith.mulf %39, %1 : vector<8x256xf32>
    %c64 = arith.constant 64 : index
    %c0_32 = arith.constant 0 : index
    %41 = vector.load %arg8[%c64, %c0_32] : memref<72x256xf32, #tpu.memory_space<vmem>>, vector<8x256xf32>
    tpu.vector_store %arg8[%c64, %c0_32], %40 {strides = array<i32>} : memref<72x256xf32, #tpu.memory_space<vmem>>, vector<8x256xf32>,
    %c0_33 = arith.constant 0 : index
    %c0_34 = arith.constant 0 : index
    %42 = vector.load %arg4[%c0_33, %c0_34] : memref<16x72xbf16, #tpu.memory_space<vmem>>, vector<16x72xbf16>
    %c0_35 = arith.constant 0 : index
    %c0_36 = arith.constant 0 : index
    %43 = vector.load %arg8[%c0_35, %c0_36] : memref<72x256xf32, #tpu.memory_space<vmem>>, vector<72x256xf32>
    %44 = arith.truncf %43 : vector<72x256xf32> to vector<72x256xbf16>
    %cst_37 = arith.constant dense<0.000000e+00> : vector<16x256xf32>
    %45 = tpu.matmul %42, %44, %cst_37 {dimension_numbers = #tpu.dot_dimension_numbers<[1], [0], [0], [1], [0, 0, 1, 1], [], []>} : vector<16x72xbf16>, vector<72x256xbf16>, vector<16x256xf32> -> vector<16x256xf32>
    %46 = vector.broadcast %6 : vector<16x1xf32> to vector<16x256xf32>
    %47 = arith.addf %45, %46 : vector<16x256xf32>
    %cst_38 = arith.constant 2.000000e-01 : f32
    %48 = vector.broadcast %cst_38 : f32 to vector<16x256xf32>
    %49 = arith.mulf %48, %47 : vector<16x256xf32>
    %50 = arith.maximumf %47, %49 : vector<16x256xf32>
    %c0_39 = arith.constant 0 : index
    %c0_40 = arith.constant 0 : index
    %51 = vector.load %arg3[%c0_39, %c0_40] : memref<8x16xbf16, #tpu.memory_space<vmem>>, vector<8x16xbf16>
    %52 = arith.truncf %50 : vector<16x256xf32> to vector<16x256xbf16>
    %cst_41 = arith.constant dense<0.000000e+00> : vector<8x256xf32>
    %53 = tpu.matmul %51, %52, %cst_41 {dimension_numbers = #tpu.dot_dimension_numbers<[1], [0], [0], [1], [0, 0, 1, 1], [], []>} : vector<8x16xbf16>, vector<16x256xbf16>, vector<8x256xf32> -> vector<8x256xf32>
    %54 = vector.broadcast %5 : vector<8x1xf32> to vector<8x256xf32>
    %55 = arith.addf %53, %54 : vector<8x256xf32>
    %cst_42 = arith.constant 2.000000e-01 : f32
    %56 = vector.broadcast %cst_42 : f32 to vector<8x256xf32>
    %57 = arith.mulf %56, %55 : vector<8x256xf32>
    %58 = arith.maximumf %55, %57 : vector<8x256xf32>
    %c1_i32_43 = arith.constant 1 : i32
    %59 = tpu.dynamic_rotate %58 by %c1_i32_43 dim 1 : vector<8x256xf32>, i32 -> vector<8x256xf32>
    %60 = arith.mulf %59, %2 : vector<8x256xf32>
    %c255_i32_44 = arith.constant 255 : i32
    %61 = tpu.dynamic_rotate %58 by %c255_i32_44 dim 1 : vector<8x256xf32>, i32 -> vector<8x256xf32>
    %62 = arith.mulf %61, %3 : vector<8x256xf32>
    %c16_i32_45 = arith.constant 16 : i32
    %63 = tpu.dynamic_rotate %60 by %c16_i32_45 dim 1 : vector<8x256xf32>, i32 -> vector<8x256xf32>
    %64 = arith.mulf %63, %0 : vector<8x256xf32>
    %c0_46 = arith.constant 0 : index
    %c0_47 = arith.constant 0 : index
    %65 = vector.load %arg8[%c0_46, %c0_47] : memref<72x256xf32, #tpu.memory_space<vmem>>, vector<8x256xf32>
    tpu.vector_store %arg8[%c0_46, %c0_47], %64 {strides = array<i32>} : memref<72x256xf32, #tpu.memory_space<vmem>>, vector<8x256xf32>,
    %c24_48 = arith.constant 24 : index
    %c0_49 = arith.constant 0 : index
    %66 = vector.load %arg8[%c24_48, %c0_49] : memref<72x256xf32, #tpu.memory_space<vmem>>, vector<8x256xf32>
    tpu.vector_store %arg8[%c24_48, %c0_49], %60 {strides = array<i32>} : memref<72x256xf32, #tpu.memory_space<vmem>>, vector<8x256xf32>,
    %c240_i32_50 = arith.constant 240 : i32
    %67 = tpu.dynamic_rotate %60 by %c240_i32_50 dim 1 : vector<8x256xf32>, i32 -> vector<8x256xf32>
    %68 = arith.mulf %67, %1 : vector<8x256xf32>
    %c48_51 = arith.constant 48 : index
    %c0_52 = arith.constant 0 : index
    %69 = vector.load %arg8[%c48_51, %c0_52] : memref<72x256xf32, #tpu.memory_space<vmem>>, vector<8x256xf32>
    tpu.vector_store %arg8[%c48_51, %c0_52], %68 {strides = array<i32>} : memref<72x256xf32, #tpu.memory_space<vmem>>, vector<8x256xf32>,
    %c16_i32_53 = arith.constant 16 : i32
    %70 = tpu.dynamic_rotate %58 by %c16_i32_53 dim 1 : vector<8x256xf32>, i32 -> vector<8x256xf32>
    %71 = arith.mulf %70, %0 : vector<8x256xf32>
    %c8_54 = arith.constant 8 : index
    %c0_55 = arith.constant 0 : index
    %72 = vector.load %arg8[%c8_54, %c0_55] : memref<72x256xf32, #tpu.memory_space<vmem>>, vector<8x256xf32>
    tpu.vector_store %arg8[%c8_54, %c0_55], %71 {strides = array<i32>} : memref<72x256xf32, #tpu.memory_space<vmem>>, vector<8x256xf32>,
    %c32_56 = arith.constant 32 : index
    %c0_57 = arith.constant 0 : index
    %73 = vector.load %arg8[%c32_56, %c0_57] : memref<72x256xf32, #tpu.memory_space<vmem>>, vector<8x256xf32>
    tpu.vector_store %arg8[%c32_56, %c0_57], %58 {strides = array<i32>} : memref<72x256xf32, #tpu.memory_space<vmem>>, vector<8x256xf32>,
    %c240_i32_58 = arith.constant 240 : i32
    %74 = tpu.dynamic_rotate %58 by %c240_i32_58 dim 1 : vector<8x256xf32>, i32 -> vector<8x256xf32>
    %75 = arith.mulf %74, %1 : vector<8x256xf32>
    %c56_59 = arith.constant 56 : index
    %c0_60 = arith.constant 0 : index
    %76 = vector.load %arg8[%c56_59, %c0_60] : memref<72x256xf32, #tpu.memory_space<vmem>>, vector<8x256xf32>
    tpu.vector_store %arg8[%c56_59, %c0_60], %75 {strides = array<i32>} : memref<72x256xf32, #tpu.memory_space<vmem>>, vector<8x256xf32>,
    %c16_i32_61 = arith.constant 16 : i32
    %77 = tpu.dynamic_rotate %62 by %c16_i32_61 dim 1 : vector<8x256xf32>, i32 -> vector<8x256xf32>
    %78 = arith.mulf %77, %0 : vector<8x256xf32>
    %c16_62 = arith.constant 16 : index
    %c0_63 = arith.constant 0 : index
    %79 = vector.load %arg8[%c16_62, %c0_63] : memref<72x256xf32, #tpu.memory_space<vmem>>, vector<8x256xf32>
    tpu.vector_store %arg8[%c16_62, %c0_63], %78 {strides = array<i32>} : memref<72x256xf32, #tpu.memory_space<vmem>>, vector<8x256xf32>,
    %c40_64 = arith.constant 40 : index
    %c0_65 = arith.constant 0 : index
    %80 = vector.load %arg8[%c40_64, %c0_65] : memref<72x256xf32, #tpu.memory_space<vmem>>, vector<8x256xf32>
    tpu.vector_store %arg8[%c40_64, %c0_65], %62 {strides = array<i32>} : memref<72x256xf32, #tpu.memory_space<vmem>>, vector<8x256xf32>,
    %c240_i32_66 = arith.constant 240 : i32
    %81 = tpu.dynamic_rotate %62 by %c240_i32_66 dim 1 : vector<8x256xf32>, i32 -> vector<8x256xf32>
    %82 = arith.mulf %81, %1 : vector<8x256xf32>
    %c64_67 = arith.constant 64 : index
    %c0_68 = arith.constant 0 : index
    %83 = vector.load %arg8[%c64_67, %c0_68] : memref<72x256xf32, #tpu.memory_space<vmem>>, vector<8x256xf32>
    tpu.vector_store %arg8[%c64_67, %c0_68], %82 {strides = array<i32>} : memref<72x256xf32, #tpu.memory_space<vmem>>, vector<8x256xf32>,
    %c0_69 = arith.constant 0 : index
    %c0_70 = arith.constant 0 : index
    %84 = vector.load %arg4[%c0_69, %c0_70] : memref<16x72xbf16, #tpu.memory_space<vmem>>, vector<16x72xbf16>
    %c0_71 = arith.constant 0 : index
    %c0_72 = arith.constant 0 : index
    %85 = vector.load %arg8[%c0_71, %c0_72] : memref<72x256xf32, #tpu.memory_space<vmem>>, vector<72x256xf32>
    %86 = arith.truncf %85 : vector<72x256xf32> to vector<72x256xbf16>
    %cst_73 = arith.constant dense<0.000000e+00> : vector<16x256xf32>
    %87 = tpu.matmul %84, %86, %cst_73 {dimension_numbers = #tpu.dot_dimension_numbers<[1], [0], [0], [1], [0, 0, 1, 1], [], []>} : vector<16x72xbf16>, vector<72x256xbf16>, vector<16x256xf32> -> vector<16x256xf32>
    %88 = vector.broadcast %6 : vector<16x1xf32> to vector<16x256xf32>
    %89 = arith.addf %87, %88 : vector<16x256xf32>
    %cst_74 = arith.constant 2.000000e-01 : f32
    %90 = vector.broadcast %cst_74 : f32 to vector<16x256xf32>
    %91 = arith.mulf %90, %89 : vector<16x256xf32>
    %92 = arith.maximumf %89, %91 : vector<16x256xf32>
    %c0_75 = arith.constant 0 : index
    %c0_76 = arith.constant 0 : index
    %c0_77 = arith.constant 0 : index
    %93 = vector.load %arg7[%c0_75, %c0_76, %c0_77] : memref<1x16x256xf32, #tpu.memory_space<vmem>>, vector<1x16x256xf32>
    %94 = vector.shape_cast %93 : vector<1x16x256xf32> to vector<16x256xf32>
    %95 = vector.shape_cast %92 : vector<16x256xf32> to vector<1x16x256xf32>
    tpu.vector_store %arg7[%c0_75, %c0_76, %c0_77], %95 {strides = array<i32>} : memref<1x16x256xf32, #tpu.memory_space<vmem>>, vector<1x16x256xf32>,
    return
  }
  func.func @transform_0(%arg0: i32) -> (i32, i32, i32) {
    %c0_i32 = arith.constant 0 : i32
    %c0_i32_0 = arith.constant 0 : i32
    %c0_i32_1 = arith.constant 0 : i32
    return %arg0, %c0_i32, %c0_i32_0 : i32, i32, i32
  }
  func.func @transform_1(%arg0: i32) -> (i32, i32) {
    %c0_i32 = arith.constant 0 : i32
    %c0_i32_0 = arith.constant 0 : i32
    %c0_i32_1 = arith.constant 0 : i32
    return %c0_i32, %c0_i32_0 : i32, i32
  }
  func.func @transform_2(%arg0: i32) -> (i32, i32) {
    %c0_i32 = arith.constant 0 : i32
    %c0_i32_0 = arith.constant 0 : i32
    %c0_i32_1 = arith.constant 0 : i32
    return %c0_i32, %c0_i32_0 : i32, i32
  }
  func.func @transform_3(%arg0: i32) -> (i32, i32) {
    %c0_i32 = arith.constant 0 : i32
    %c0_i32_0 = arith.constant 0 : i32
    %c0_i32_1 = arith.constant 0 : i32
    return %c0_i32, %c0_i32_0 : i32, i32
  }
  func.func @transform_4(%arg0: i32) -> (i32, i32) {
    %c0_i32 = arith.constant 0 : i32
    %c0_i32_0 = arith.constant 0 : i32
    %c0_i32_1 = arith.constant 0 : i32
    return %c0_i32, %c0_i32_0 : i32, i32
  }
  func.func @transform_5(%arg0: i32) -> (i32, i32) {
    %c0_i32 = arith.constant 0 : i32
    %c0_i32_0 = arith.constant 0 : i32
    %c0_i32_1 = arith.constant 0 : i32
    return %c0_i32, %c0_i32_0 : i32, i32
  }
  func.func @transform_6(%arg0: i32) -> (i32, i32, i32) {
    %c0_i32 = arith.constant 0 : i32
    %c0_i32_0 = arith.constant 0 : i32
    %c0_i32_1 = arith.constant 0 : i32
    return %arg0, %c0_i32, %c0_i32_0 : i32, i32, i32
  }
}

</mosaic_0001>

<llo_original>
// kernel: upsample_forward.1
$region0: #{upsample_forward.1}
  #allocation0 [shape = 'u32[]', space=smem, size = 0x4, offset = 0x4, fixed_abs, tag = 'smem constant byte address 0x4 - core index']
  #allocation1 [shape = 'u32[144,128]{1,0:T(1,128)}', space=vmem, size = 0x12000, scoped, tag = 'internal scratch']
  #allocation2 [shape = 'f32[72,256]{1,0:T(8,128)}', space=vmem, size = 0x12000, scoped, tag = 'scratch operand']
  %s0 = inlined_call_operand.vmem [shape: f32[2,4,256], index: 0, kind: input, shape index: {}]
  %s1 = inlined_call_operand.vmem [shape: bf16[8,4], index: 1, kind: input, shape index: {}]
  %s2 = inlined_call_operand.vmem [shape: bf16[8,16], index: 2, kind: input, shape index: {}]
  %s3 = inlined_call_operand.vmem [shape: bf16[16,72], index: 3, kind: input, shape index: {}]
  %s4 = inlined_call_operand.vmem [shape: f32[32,1], index: 4, kind: input, shape index: {}]
  %s5 = inlined_call_operand.vmem [shape: f32[32,256], index: 5, kind: input, shape index: {}]
  %s6 = inlined_call_operand.vmem [shape: f32[2,16,256], index: 6, kind: output, shape index: {}]
  %s7 = sld [smem:[#allocation0]]
  $region57: #{upsample_forward.1} parent=0
    _
  %s9 = ssub.s32 1, %s7
  %s10 = scalar_select 0, %s9, %s7
  loop: start=0, step=1, limit=4
  $region2: #{upsample_forward.1} parent=0 // loop_pre_header
    _
  $region3: #{upsample_forward.1} parent=0 // loop_header
    %s12 = sphi 0, %s16
    %p13 = scmp.ge.s32.totalorder %s12, 4
    %s22 = sphi 0, %s24
    %s25 = sphi 0, %s22
    %s26 = sphi 0, %s25
    %s42 = sphi 0, %s26
    %s46 = sphi 0, %s46
    %s48 = sphi 0, %s46
    %s49 = sphi 0, %s48
    %s63 = sphi 0, %s49
    %s67 = sphi 0, %s67
    %s69 = sphi 0, %s67
    %s70 = sphi 0, %s69
    %s84 = sphi 0, %s70
    %s88 = sphi 0, %s88
    %s90 = sphi 0, %s88
    %s91 = sphi 0, %s90
    %s105 = sphi 0, %s91
    %s109 = sphi 0, %s109
    %s111 = sphi 0, %s109
    %s112 = sphi 0, %s111
    %s126 = sphi 0, %s112
    %s130 = sphi 0, %s130
    %s132 = sphi 0, %s130
    %s133 = sphi 0, %s132
    %s147 = sphi 0, %s133
    %s153 = sphi 0, %s155
    %s156 = sphi 0, %s153
    %s157 = sphi 0, %s156
    %s173 = sphi 0, %s157
  $region4: #{upsample_forward.1} parent=0 // loop_header_branch
    %15 = sbr.rel (%p13) target = $region8
  $region5: #{upsample_forward.1} parent=0 // loop_body
    %s17 = ssub.s32 %s12, 1
    %s18 = ssub.s32 %s12, 2
    %s19 = sadd.s32 %s12, 1
    %s20 = ssub.s32 %s12, %s19
    %p21 = scmp.eq.s32.totalorder %s20, 0
    %s23 = sadd.s32 %s22, 1
    %s24 = scalar_select %p21, %s22, %s23
    %p27 = pneg %p21
    %p28 = scmp.eq.s32.totalorder %s12, 1
    %p29 = por %p27, %p28
    %p30 = scmp.ne.s32.totalorder %s22, %s25
    %p31 = scmp.eq.s32.totalorder %s12, 0
    %p32 = por %p30, %p31
    %p33 = scmp.ne.s32.totalorder %s22, %s25
    %p34 = scmp.eq.s32.totalorder %s17, 1
    %p35 = por %p33, %p34
    %p36 = scmp.ne.s32.totalorder %s25, %s26
    %p37 = scmp.eq.s32.totalorder %s17, 0
    %p38 = por %p36, %p37
    %p39 = scmp.ne.s32.totalorder %s25, %s26
    %p40 = scmp.eq.s32.totalorder %s18, 1
    %p41 = por %p39, %p40
    %p43 = scmp.ne.s32.totalorder %s26, %s42
    %p44 = scmp.eq.s32.totalorder %s18, 0
    %p45 = por %p43, %p44
    %s47 = sadd.s32 %s46, 1
    %p50 = scmp.eq.s32.totalorder %s12, 1
    %p51 = scmp.ne.s32.totalorder %s46, %s48
    %p52 = scmp.eq.s32.totalorder %s12, 0
    %p53 = por %p51, %p52
    %p54 = scmp.ne.s32.totalorder %s46, %s48
    %p55 = scmp.eq.s32.totalorder %s17, 1
    %p56 = por %p54, %p55
    %p57 = scmp.ne.s32.totalorder %s48, %s49
    %p58 = scmp.eq.s32.totalorder %s17, 0
    %p59 = por %p57, %p58
    %p60 = scmp.ne.s32.totalorder %s48, %s49
    %p61 = scmp.eq.s32.totalorder %s18, 1
    %p62 = por %p60, %p61
    %p64 = scmp.ne.s32.totalorder %s49, %s63
    %p65 = scmp.eq.s32.totalorder %s18, 0
    %p66 = por %p64, %p65
    %s68 = sadd.s32 %s67, 1
    %p71 = scmp.eq.s32.totalorder %s12, 1
    %p72 = scmp.ne.s32.totalorder %s67, %s69
    %p73 = scmp.eq.s32.totalorder %s12, 0
    %p74 = por %p72, %p73
    %p75 = scmp.ne.s32.totalorder %s67, %s69
    %p76 = scmp.eq.s32.totalorder %s17, 1
    %p77 = por %p75, %p76
    %p78 = scmp.ne.s32.totalorder %s69, %s70
    %p79 = scmp.eq.s32.totalorder %s17, 0
    %p80 = por %p78, %p79
    %p81 = scmp.ne.s32.totalorder %s69, %s70
    %p82 = scmp.eq.s32.totalorder %s18, 1
    %p83 = por %p81, %p82
    %p85 = scmp.ne.s32.totalorder %s70, %s84
    %p86 = scmp.eq.s32.totalorder %s18, 0
    %p87 = por %p85, %p86
    %s89 = sadd.s32 %s88, 1
    %p92 = scmp.eq.s32.totalorder %s12, 1
    %p93 = scmp.ne.s32.totalorder %s88, %s90
    %p94 = scmp.eq.s32.totalorder %s12, 0
    %p95 = por %p93, %p94
    %p96 = scmp.ne.s32.totalorder %s88, %s90
    %p97 = scmp.eq.s32.totalorder %s17, 1
    %p98 = por %p96, %p97
    %p99 = scmp.ne.s32.totalorder %s90, %s91
    %p100 = scmp.eq.s32.totalorder %s17, 0
    %p101 = por %p99, %p100
    %p102 = scmp.ne.s32.totalorder %s90, %s91
    %p103 = scmp.eq.s32.totalorder %s18, 1
    %p104 = por %p102, %p103
    %p106 = scmp.ne.s32.totalorder %s91, %s105
    %p107 = scmp.eq.s32.totalorder %s18, 0
    %p108 = por %p106, %p107
    %s110 = sadd.s32 %s109, 1
    %p113 = scmp.eq.s32.totalorder %s12, 1
    %p114 = scmp.ne.s32.totalorder %s109, %s111
    %p115 = scmp.eq.s32.totalorder %s12, 0
    %p116 = por %p114, %p115
    %p117 = scmp.ne.s32.totalorder %s109, %s111
    %p118 = scmp.eq.s32.totalorder %s17, 1
    %p119 = por %p117, %p118
    %p120 = scmp.ne.s32.totalorder %s111, %s112
    %p121 = scmp.eq.s32.totalorder %s17, 0
    %p122 = por %p120, %p121
    %p123 = scmp.ne.s32.totalorder %s111, %s112
    %p124 = scmp.eq.s32.totalorder %s18, 1
    %p125 = por %p123, %p124
    %p127 = scmp.ne.s32.totalorder %s112, %s126
    %p128 = scmp.eq.s32.totalorder %s18, 0
    %p129 = por %p127, %p128
    %s131 = sadd.s32 %s130, 1
    %p134 = scmp.eq.s32.totalorder %s12, 1
    %p135 = scmp.ne.s32.totalorder %s130, %s132
    %p136 = scmp.eq.s32.totalorder %s12, 0
    %p137 = por %p135, %p136
    %p138 = scmp.ne.s32.totalorder %s130, %s132
    %p139 = scmp.eq.s32.totalorder %s17, 1
    %p140 = por %p138, %p139
    %p141 = scmp.ne.s32.totalorder %s132, %s133
    %p142 = scmp.eq.s32.totalorder %s17, 0
    %p143 = por %p141, %p142
    %p144 = scmp.ne.s32.totalorder %s132, %s133
    %p145 = scmp.eq.s32.totalorder %s18, 1
    %p146 = por %p144, %p145
    %p148 = scmp.ne.s32.totalorder %s133, %s147
    %p149 = scmp.eq.s32.totalorder %s18, 0
    %p150 = por %p148, %p149
    %s151 = ssub.s32 %s12, %s19
    %p152 = scmp.eq.s32.totalorder %s151, 0
    %s154 = sadd.s32 %s153, 1
    %s155 = scalar_select %p152, %s153, %s154
    %p158 = pneg %p152
    %p159 = scmp.eq.s32.totalorder %s12, 1
    %p160 = por %p158, %p159
    %p161 = scmp.ne.s32.totalorder %s153, %s156
    %p162 = scmp.eq.s32.totalorder %s12, 0
    %p163 = por %p161, %p162
    %p164 = scmp.ne.s32.totalorder %s153, %s156
    %p165 = scmp.eq.s32.totalorder %s17, 1
    %p166 = por %p164, %p165
    %p167 = scmp.ne.s32.totalorder %s156, %s157
    %p168 = scmp.eq.s32.totalorder %s17, 0
    %p169 = por %p167, %p168
    %p170 = scmp.ne.s32.totalorder %s156, %s157
    %p171 = scmp.eq.s32.totalorder %s18, 1
    %p172 = por %p170, %p171
    %p174 = scmp.ne.s32.totalorder %s157, %s173
    %p175 = scmp.eq.s32.totalorder %s18, 0
    %p176 = por %p174, %p175
    %p177 = scmp.le.s32.totalorder 1, %s12
    %p178 = scmp.lt.s32.totalorder %s12, 3
    %p179 = pnand %p177, %p178
    %p180 = pneg %p179
    // Predicated region
    $region9: #{upsample_forward.1} parent=5 // pred_check
      _
    $region10: #{upsample_forward.1} parent=5 // pred_check_branch
      %182 = sbr.rel (%p179) target = $region12
    $region11: #{upsample_forward.1} parent=5 // pred_region
      %s183 = ssub.s32 %s12, 1
      // Predicated region
      $region13: #{upsample_forward.1} parent=11 // pred_check
        %p184 = pneg %p59
      $region14: #{upsample_forward.1} parent=11 // pred_check_branch
        %186 = sbr.rel (%p184) target = $region16
      $region15: #{upsample_forward.1} parent=11 // pred_region
        _
      $region16: #{upsample_forward.1} parent=11 // pred_fallthru
        _
      // Predicated region
      $region17: #{upsample_forward.1} parent=11 // pred_check
        %p187 = pneg %p80
      $region18: #{upsample_forward.1} parent=11 // pred_check_branch
        %189 = sbr.rel (%p187) target = $region20
      $region19: #{upsample_forward.1} parent=11 // pred_region
        _
      $region20: #{upsample_forward.1} parent=11 // pred_fallthru
        _
      // Predicated region
      $region21: #{upsample_forward.1} parent=11 // pred_check
        %p190 = pneg %p101
      $region22: #{upsample_forward.1} parent=11 // pred_check_branch
        %192 = sbr.rel (%p190) target = $region24
      $region23: #{upsample_forward.1} parent=11 // pred_region
        _
      $region24: #{upsample_forward.1} parent=11 // pred_fallthru
        _
      // Predicated region
      $region25: #{upsample_forward.1} parent=11 // pred_check
        %p193 = pneg %p122
      $region26: #{upsample_forward.1} parent=11 // pred_check_branch
        %195 = sbr.rel (%p193) target = $region28
      $region27: #{upsample_forward.1} parent=11 // pred_region
        _
      $region28: #{upsample_forward.1} parent=11 // pred_fallthru
        _
      // Predicated region
      $region29: #{upsample_forward.1} parent=11 // pred_check
        %p196 = pneg %p143
      $region30: #{upsample_forward.1} parent=11 // pred_check_branch
        %198 = sbr.rel (%p196) target = $region32
      $region31: #{upsample_forward.1} parent=11 // pred_region
        _
      $region32: #{upsample_forward.1} parent=11 // pred_fallthru
        _
    $region12: #{upsample_forward.1} parent=5 // pred_fallthru
      _
    %p199 = scmp.lt.s32.totalorder %s12, 2
    // Predicated region
    $region33: #{upsample_forward.1} parent=5 // pred_check
      %p200 = pneg %p199
    $region34: #{upsample_forward.1} parent=5 // pred_check_branch
      %202 = sbr.rel (%p200) target = $region36
    $region35: #{upsample_forward.1} parent=5 // pred_region
      // Predicated region
      $region37: #{upsample_forward.1} parent=35 // pred_check
        %p203 = pneg %p32
      $region38: #{upsample_forward.1} parent=35 // pred_check_branch
        %205 = sbr.rel (%p203) target = $region40
      $region39: #{upsample_forward.1} parent=35 // pred_region
        %p206 = scmp.lt.s32.totalorder %s12, 1
        %s207 = scalar_select %p206, %s12, 1
        %s208 = smul.addr %s207, 2
        %s209 = smul.addr %s208, 4
        %s210 = scalar_lea.vmem %s0, %s209
      $region40: #{upsample_forward.1} parent=35 // pred_fallthru
        _
    $region36: #{upsample_forward.1} parent=5 // pred_fallthru
      _
    %p211 = scmp.le.s32.totalorder 1, %s12
    %p212 = scmp.lt.s32.totalorder %s12, 3
    %p213 = pnand %p211, %p212
    %p214 = pneg %p213
    // Predicated region
    $region41: #{upsample_forward.1} parent=5 // pred_check
      _
    $region42: #{upsample_forward.1} parent=5 // pred_check_branch
      %216 = sbr.rel (%p213) target = $region44
    $region43: #{upsample_forward.1} parent=5 // pred_region
      %s217 = ssub.s32 %s12, 1
      %p218 = scmp.lt.s32.totalorder %s17, 1
      %s219 = scalar_select %p218, %s17, 1
      %s220 = smul.addr %s219, 2
      %s221 = smul.addr %s220, 4
      %s222 = scalar_lea.vmem %s0, %s221
      %p223 = pneg %p38
      %p224 = pneg %p35
      %p225 = pneg %p59
      %p226 = pneg %p56
      %p227 = pneg %p80
      %p228 = pneg %p77
      %p229 = pneg %p101
      %p230 = pneg %p98
      %p231 = pneg %p122
      %p232 = pneg %p119
      %p233 = pneg %p143
      %p234 = pneg %p140
      %p235 = pneg %p169
      %p236 = pneg %p166
      %p237 = scmp.lt.s32.totalorder %s17, 1
      %s238 = scalar_select %p237, %s17, 1
      %s239 = smul.addr %s238, 4
      %s240 = smul.addr %s239, 8
      %s241 = scalar_lea.vmem %s6, %s240
      %p242 = scmp.lt.s32.totalorder %s17, 1
      %s243 = scalar_select %p242, %s17, 1
      %s244 = smul.addr %s243, 2
      %s245 = smul.addr %s244, 4
      %s246 = scalar_lea.vmem %s0, %s245
      %p247 = scmp.lt.s32.totalorder %s17, 1
      %s248 = scalar_select %p247, %s17, 1
      %s249 = smul.addr %s248, 4
      %s250 = smul.addr %s249, 8
      %s251 = scalar_lea.vmem %s6, %s250
      %v253 = vld [vmem:[%s5] sm:$0xff]
      %v254 = vld [vmem:[%s5 + $0x8] sm:$0xff]
      %v255 = vld [vmem:[%s5 + $0x10] sm:$0xff]
      %v256 = vld [vmem:[%s5 + $0x18] sm:$0xff]
      %v257 = vld [vmem:[%s5 + $0x20] sm:$0xff]
      %v258 = vld [vmem:[%s5 + $0x28] sm:$0xff]
      %v259 = vld [vmem:[%s5 + $0x30] sm:$0xff]
      %v260 = vld [vmem:[%s5 + $0x38] sm:$0xff]
      %v261 = vld [vmem:[%s4] sm:$0xff]
      %v262 = vld [vmem:[%s4 + $0x8] sm:$0xff]
      %v263 = vld [vmem:[%s4 + $0x10] sm:$0xff]
      %v264 = vld [vmem:[%s4 + $0x18] sm:$0xff]
      %v265 = vld [vmem:[%s1] sm:$0xf]
      %v266 = vld [vmem:[%s246] sm:$0xff]
      %v268 = vcombine.high %v266, %v266
      %v270 = vpack.c.bf16 %v266, %v266
      %v271 = vpack.c.bf16 %v268, %v268
      %273 = vset.pattern.permute.xlu0 0
      %274 = vperm.xlu0 %273, %v261
      %v275 = vpop.permute.xlu0 %274
      %vm277 = vcmask 31744
      %v279 = vsel %vm277, %v265, 0
      %vm281 = vcmask 1041408
      %v283 = vsel %vm281, %v270, 0
      %v286 = vsel %vm281, %v271, 0
      %288 = vmatprep.subr.bf16.mxu0 0
      %289 = vmatpush1.bf16.msra.mxu0 0
      %290 = vmatprep.subr.bf16.mxu0 0
      %291 = vmatpush1.bf16.msra.mxu0 0
      %292 = vmatprep.subr.bf16.mxu0 0
      %293 = vmatpush1.bf16.msra.mxu0 0
      %294 = vmatprep.subr.bf16.mxu0 0
      %295 = vmatpush1.bf16.msra.mxu0 0
      %296 = vmatprep.subr.bf16.mxu0 0
      %297 = vmatpush1.bf16.msra.mxu0 0
      %298 = vmatprep.subr.bf16.mxu0 0
      %299 = vmatpush1.bf16.msra.mxu0 0
      %300 = vmatprep.subr.bf16.mxu0 0
      %301 = vmatpush1.bf16.msra.mxu0 0
      %302 = vmatprep.subr.bf16.mxu0 %v286
      %303 = vmatpush1.bf16.msra.mxu0 %v283
      %304 = vmatprep.subr.bf16.mxu0 0
      %305 = vmatpush2.bf16.msra.mxu0 0
      %306 = vmatprep.subr.bf16.mxu0 0
      %307 = vmatpush2.bf16.msra.mxu0 0
      %308 = vmatprep.subr.bf16.mxu0 0
      %309 = vmatpush2.bf16.msra.mxu0 0
      %310 = vmatprep.subr.bf16.mxu0 0
      %311 = vmatpush2.bf16.msra.mxu0 0
      %312 = vmatprep.subr.bf16.mxu0 0
      %313 = vmatpush2.bf16.msra.mxu0 0
      %314 = vmatprep.subr.bf16.mxu0 0
      %315 = vmatpush2.bf16.msra.mxu0 0
      %316 = vmatprep.subr.bf16.mxu0 0
      %317 = vmatpush2.bf16.msra.mxu0 0
      %318 = vmatprep.subr.bf16.mxu0 0
      %319 = vmatpush2.bf16.msra.mxu0 0
      %320 = vmatprep.mubr.bf16.mxu0 0
      %321 = vmatmul.mubr.bf16.gmra.mxu0 %v279
      %v322 = vpop.f32.mrf.mxu0
      %v323 = vadd.f32 %v275, %v322
      %v324 = vpop.f32.mrf.mxu0
      %v325 = vadd.f32 %v275, %v324
      %v326 = vpop.f32.mrf.mxu0
      %v327 = vpop.f32.mrf.mxu0
      %328 = vdwg.mxu0
      %v329 = vmul.f32 %v323, 0.2
      %v330 = vmul.f32 %v325, 0.2
      %v331 = vmax.f32 %v323, %v329
      %v332 = vmax.f32 %v325, %v330
      %333 = vrot.lane.b32.xlu0 %v331, 1
      %v334 = vpop.permute.xlu0 %333
      %335 = vrot.lane.b32.xlu0 %v332, 1
      %v336 = vpop.permute.xlu0 %335
      %v337 = vlaneseq
      %v338 = vand.u32 %v337, 127
      %vm339 = vcmp.lt.s32.totalorder %v338, 1
      %v340 = vsel %vm339, %v334, %v336
      %v341 = vsel %vm339, %v336, %v334
      %v342 = vmul.f32 %v341, %v257
      %v343 = vmul.f32 %v340, %v258
      %344 = vrot.lane.b32.xlu0 %v331, 127
      %v345 = vpop.permute.xlu0 %344
      %346 = vrot.lane.b32.xlu0 %v332, 127
      %v347 = vpop.permute.xlu0 %346
      %vm348 = vcmp.lt.s32.totalorder %v338, 127
      %v349 = vsel %vm348, %v345, %v347
      %v350 = vsel %vm348, %v347, %v345
      %v351 = vmul.f32 %v349, %v259
      %v352 = vmul.f32 %v350, %v260
      %353 = vrot.lane.b32.xlu0 %v342, 16
      %v354 = vpop.permute.xlu0 %353
      %355 = vrot.lane.b32.xlu0 %v343, 16
      %v356 = vpop.permute.xlu0 %355
      %vm357 = vcmp.lt.s32.totalorder %v338, 16
      %v358 = vsel %vm357, %v354, %v356
      %v359 = vsel %vm357, %v356, %v354
      %v360 = vmul.f32 %v359, %v253
      %v361 = vmul.f32 %v358, %v254
      %362 = vst [vmem:[#allocation2] sm:$0xff] %v360
      %363 = vst [vmem:[#allocation2 + $0x8] sm:$0xff] %v361
      %364 = vst [vmem:[#allocation2 + $0x30] sm:$0xff] %v342
      %365 = vst [vmem:[#allocation2 + $0x38] sm:$0xff] %v343
      %366 = vrot.lane.b32.xlu0 %v342, 112
      %v367 = vpop.permute.xlu0 %366
      %368 = vrot.lane.b32.xlu0 %v343, 112
      %v369 = vpop.permute.xlu0 %368
      %vm370 = vcmp.lt.s32.totalorder %v338, 112
      %v371 = vsel %vm370, %v367, %v369
      %v372 = vsel %vm370, %v369, %v367
      %v373 = vmul.f32 %v371, %v255
      %v374 = vmul.f32 %v372, %v256
      %375 = vst [vmem:[#allocation2 + $0x60] sm:$0xff] %v373
      %376 = vst [vmem:[#allocation2 + $0x68] sm:$0xff] %v374
      %377 = vrot.lane.b32.xlu0 %v331, 16
      %v378 = vpop.permute.xlu0 %377
      %379 = vrot.lane.b32.xlu0 %v332, 16
      %v380 = vpop.permute.xlu0 %379
      %v381 = vsel %vm357, %v378, %v380
      %v382 = vsel %vm357, %v380, %v378
      %v383 = vmul.f32 %v382, %v253
      %v384 = vmul.f32 %v381, %v254
      %385 = vst [vmem:[#allocation2 + $0x10] sm:$0xff] %v383
      %386 = vst [vmem:[#allocation2 + $0x18] sm:$0xff] %v384
      %387 = vst [vmem:[#allocation2 + $0x40] sm:$0xff] %v331
      %388 = vst [vmem:[#allocation2 + $0x48] sm:$0xff] %v332
      %389 = vrot.lane.b32.xlu0 %v331, 112
      %v390 = vpop.permute.xlu0 %389
      %391 = vrot.lane.b32.xlu0 %v332, 112
      %v392 = vpop.permute.xlu0 %391
      %v393 = vsel %vm370, %v390, %v392
      %v394 = vsel %vm370, %v392, %v390
      %v395 = vmul.f32 %v393, %v255
      %v396 = vmul.f32 %v394, %v256
      %397 = vst [vmem:[#allocation2 + $0x70] sm:$0xff] %v395
      %398 = vst [vmem:[#allocation2 + $0x78] sm:$0xff] %v396
      %399 = vrot.lane.b32.xlu0 %v351, 16
      %v400 = vpop.permute.xlu0 %399
      %401 = vrot.lane.b32.xlu0 %v352, 16
      %v402 = vpop.permute.xlu0 %401
      %v403 = vsel %vm357, %v400, %v402
      %v404 = vsel %vm357, %v402, %v400
      %v405 = vmul.f32 %v404, %v253
      %v406 = vmul.f32 %v403, %v254
      %407 = vst [vmem:[#allocation2 + $0x20] sm:$0xff] %v405
      %408 = vst [vmem:[#allocation2 + $0x28] sm:$0xff] %v406
      %409 = vst [vmem:[#allocation2 + $0x50] sm:$0xff] %v351
      %410 = vst [vmem:[#allocation2 + $0x58] sm:$0xff] %v352
      %411 = vrot.lane.b32.xlu0 %v351, 112
      %v412 = vpop.permute.xlu0 %411
      %413 = vrot.lane.b32.xlu0 %v352, 112
      %v414 = vpop.permute.xlu0 %413
      %v415 = vsel %vm370, %v412, %v414
      %v416 = vsel %vm370, %v414, %v412
      %v417 = vmul.f32 %v415, %v255
      %v418 = vmul.f32 %v416, %v256
      %419 = vst [vmem:[#allocation2 + $0x80] sm:$0xff] %v417
      %420 = vst [vmem:[#allocation2 + $0x88] sm:$0xff] %v418
      %v421 = vld [vmem:[%s3] sm:$0xf]
      %v422 = vld [vmem:[%s3 + $0x4] sm:$0xf]
      %v423 = vld [vmem:[#allocation2] sm:$0xff]
      %v424 = vld [vmem:[#allocation2 + $0x8] sm:$0xff]
      %v425 = vld [vmem:[#allocation2 + $0x10] sm:$0xff]
      %v426 = vld [vmem:[#allocation2 + $0x18] sm:$0xff]
      %v427 = vld [vmem:[#allocation2 + $0x20] sm:$0xff]
      %v428 = vld [vmem:[#allocation2 + $0x28] sm:$0xff]
      %v429 = vld [vmem:[#allocation2 + $0x30] sm:$0xff]
      %v430 = vld [vmem:[#allocation2 + $0x38] sm:$0xff]
      %v431 = vld [vmem:[#allocation2 + $0x40] sm:$0xff]
      %v432 = vld [vmem:[#allocation2 + $0x48] sm:$0xff]
      %v433 = vld [vmem:[#allocation2 + $0x50] sm:$0xff]
      %v434 = vld [vmem:[#allocation2 + $0x58] sm:$0xff]
      %v435 = vld [vmem:[#allocation2 + $0x60] sm:$0xff]
      %v436 = vld [vmem:[#allocation2 + $0x68] sm:$0xff]
      %v437 = vld [vmem:[#allocation2 + $0x70] sm:$0xff]
      %v438 = vld [vmem:[#allocation2 + $0x78] sm:$0xff]
      %v439 = vld [vmem:[#allocation2 + $0x80] sm:$0xff]
      %v440 = vld [vmem:[#allocation2 + $0x88] sm:$0xff]
      %v441 = vpack.c.bf16 %v425, %v423
      %v442 = vpack.c.bf16 %v426, %v424
      %v443 = vpack.c.bf16 %v429, %v427
      %v444 = vpack.c.bf16 %v430, %v428
      %v445 = vpack.c.bf16 %v433, %v431
      %v446 = vpack.c.bf16 %v434, %v432
      %v447 = vpack.c.bf16 %v437, %v435
      %v448 = vpack.c.bf16 %v438, %v436
      %v449 = vpack.c.bf16 %v439, %v439
      %v450 = vpack.c.bf16 %v440, %v440
      %452 = vset.pattern.permute.xlu0 0
      %453 = vperm.xlu0 %452, %v263
      %v454 = vpop.permute.xlu0 %453
      %457 = vset.pattern.permute.xlu0 0
      %458 = vperm.xlu0 %457, %v264
      %v459 = vpop.permute.xlu0 %458
      %v463 = vunpack.c.l.b16 %v421
      %v464 = vunpack.c.l.b16 %v422
      %v465 = vpack.c.b16 %v464, %v463
      %vm466 = vcmask 588800
      %v468 = vsel %vm466, %v465, 0
      %vm470 = vcmask 1043456
      %v472 = vsel %vm470, %v449, 0
      %v475 = vsel %vm470, %v450, 0
      %477 = vmatprep.subr.bf16.mxu0 0
      %478 = vmatpush1.bf16.msra.mxu0 0
      %479 = vmatprep.subr.bf16.mxu0 0
      %480 = vmatpush1.bf16.msra.mxu0 0
      %481 = vmatprep.subr.bf16.mxu0 0
      %482 = vmatpush1.bf16.msra.mxu0 0
      %483 = vmatprep.subr.bf16.mxu0 %v475
      %484 = vmatpush1.bf16.msra.mxu0 %v472
      %485 = vmatprep.subr.bf16.mxu0 %v448
      %486 = vmatpush1.bf16.msra.mxu0 %v447
      %487 = vmatprep.subr.bf16.mxu0 %v446
      %488 = vmatpush1.bf16.msra.mxu0 %v445
      %489 = vmatprep.subr.bf16.mxu0 %v444
      %490 = vmatpush1.bf16.msra.mxu0 %v443
      %491 = vmatprep.subr.bf16.mxu0 %v442
      %492 = vmatpush1.bf16.msra.mxu0 %v441
      %493 = vmatprep.subr.bf16.mxu0 0
      %494 = vmatpush2.bf16.msra.mxu0 0
      %495 = vmatprep.subr.bf16.mxu0 0
      %496 = vmatpush2.bf16.msra.mxu0 0
      %497 = vmatprep.subr.bf16.mxu0 0
      %498 = vmatpush2.bf16.msra.mxu0 0
      %499 = vmatprep.subr.bf16.mxu0 0
      %500 = vmatpush2.bf16.msra.mxu0 0
      %501 = vmatprep.subr.bf16.mxu0 0
      %502 = vmatpush2.bf16.msra.mxu0 0
      %503 = vmatprep.subr.bf16.mxu0 0
      %504 = vmatpush2.bf16.msra.mxu0 0
      %505 = vmatprep.subr.bf16.mxu0 0
      %506 = vmatpush2.bf16.msra.mxu0 0
      %507 = vmatprep.subr.bf16.mxu0 0
      %508 = vmatpush2.bf16.msra.mxu0 0
      %509 = vmatprep.mubr.bf16.mxu0 0
      %510 = vmatmul.mubr.bf16.gmra.mxu0 %v468
      %v511 = vpop.f32.mrf.mxu0
      %v512 = vadd.f32 %v454, %v511
      %v513 = vpop.f32.mrf.mxu0
      %v514 = vadd.f32 %v454, %v513
      %v515 = vpop.f32.mrf.mxu0
      %v516 = vadd.f32 %v459, %v515
      %v517 = vpop.f32.mrf.mxu0
      %v518 = vadd.f32 %v459, %v517
      %519 = vdwg.mxu0
      %v520 = vmul.f32 %v512, 0.2
      %v521 = vmul.f32 %v514, 0.2
      %v522 = vmul.f32 %v516, 0.2
      %v523 = vmul.f32 %v518, 0.2
      %v524 = vmax.f32 %v512, %v520
      %v525 = vmax.f32 %v514, %v521
      %v526 = vmax.f32 %v516, %v522
      %v527 = vmax.f32 %v518, %v523
      %v528 = vld [vmem:[%s2] sm:$0xf]
      %v529 = vpack.c.bf16 %v526, %v524
      %v530 = vpack.c.bf16 %v527, %v525
      %532 = vset.pattern.permute.xlu0 0
      %533 = vperm.xlu0 %532, %v262
      %v534 = vpop.permute.xlu0 %533
      %vm536 = vcmask 130048
      %v538 = vsel %vm536, %v528, 0
      %540 = vmatprep.subr.bf16.mxu0 0
      %541 = vmatpush1.bf16.msra.mxu0 0
      %542 = vmatprep.subr.bf16.mxu0 0
      %543 = vmatpush1.bf16.msra.mxu0 0
      %544 = vmatprep.subr.bf16.mxu0 0
      %545 = vmatpush1.bf16.msra.mxu0 0
      %546 = vmatprep.subr.bf16.mxu0 0
      %547 = vmatpush1.bf16.msra.mxu0 0
      %548 = vmatprep.subr.bf16.mxu0 0
      %549 = vmatpush1.bf16.msra.mxu0 0
      %550 = vmatprep.subr.bf16.mxu0 0
      %551 = vmatpush1.bf16.msra.mxu0 0
      %552 = vmatprep.subr.bf16.mxu0 0
      %553 = vmatpush1.bf16.msra.mxu0 0
      %554 = vmatprep.subr.bf16.mxu0 %v530
      %555 = vmatpush1.bf16.msra.mxu0 %v529
      %556 = vmatprep.subr.bf16.mxu0 0
      %557 = vmatpush2.bf16.msra.mxu0 0
      %558 = vmatprep.subr.bf16.mxu0 0
      %559 = vmatpush2.bf16.msra.mxu0 0
      %560 = vmatprep.subr.bf16.mxu0 0
      %561 = vmatpush2.bf16.msra.mxu0 0
      %562 = vmatprep.subr.bf16.mxu0 0
      %563 = vmatpush2.bf16.msra.mxu0 0
      %564 = vmatprep.subr.bf16.mxu0 0
      %565 = vmatpush2.bf16.msra.mxu0 0
      %566 = vmatprep.subr.bf16.mxu0 0
      %567 = vmatpush2.bf16.msra.mxu0 0
      %568 = vmatprep.subr.bf16.mxu0 0
      %569 = vmatpush2.bf16.msra.mxu0 0
      %570 = vmatprep.subr.bf16.mxu0 0
      %571 = vmatpush2.bf16.msra.mxu0 0
      %572 = vmatprep.mubr.bf16.mxu0 0
      %573 = vmatmul.mubr.bf16.gmra.mxu0 %v538
      %v574 = vpop.f32.mrf.mxu0
      %v575 = vadd.f32 %v534, %v574
      %v576 = vpop.f32.mrf.mxu0
      %v577 = vadd.f32 %v534, %v576
      %v578 = vpop.f32.mrf.mxu0
      %v579 = vpop.f32.mrf.mxu0
      %580 = vdwg.mxu0
      %v581 = vmul.f32 %v575, 0.2
      %v582 = vmul.f32 %v577, 0.2
      %v583 = vmax.f32 %v575, %v581
      %v584 = vmax.f32 %v577, %v582
      %585 = vrot.lane.b32.xlu0 %v583, 1
      %v586 = vpop.permute.xlu0 %585
      %587 = vrot.lane.b32.xlu0 %v584, 1
      %v588 = vpop.permute.xlu0 %587
      %v589 = vsel %vm339, %v586, %v588
      %v590 = vsel %vm339, %v588, %v586
      %v591 = vmul.f32 %v590, %v257
      %v592 = vmul.f32 %v589, %v258
      %593 = vrot.lane.b32.xlu0 %v583, 127
      %v594 = vpop.permute.xlu0 %593
      %595 = vrot.lane.b32.xlu0 %v584, 127
      %v596 = vpop.permute.xlu0 %595
      %v597 = vsel %vm348, %v594, %v596
      %v598 = vsel %vm348, %v596, %v594
      %v599 = vmul.f32 %v597, %v259
      %v600 = vmul.f32 %v598, %v260
      %601 = vrot.lane.b32.xlu0 %v591, 16
      %v602 = vpop.permute.xlu0 %601
      %603 = vrot.lane.b32.xlu0 %v592, 16
      %v604 = vpop.permute.xlu0 %603
      %v605 = vsel %vm357, %v602, %v604
      %v606 = vsel %vm357, %v604, %v602
      %v607 = vmul.f32 %v606, %v253
      %v608 = vmul.f32 %v605, %v254
      %609 = vst [vmem:[#allocation2] sm:$0xff] %v607
      %610 = vst [vmem:[#allocation2 + $0x8] sm:$0xff] %v608
      %611 = vst [vmem:[#allocation2 + $0x30] sm:$0xff] %v591
      %612 = vst [vmem:[#allocation2 + $0x38] sm:$0xff] %v592
      %613 = vrot.lane.b32.xlu0 %v591, 112
      %v614 = vpop.permute.xlu0 %613
      %615 = vrot.lane.b32.xlu0 %v592, 112
      %v616 = vpop.permute.xlu0 %615
      %v617 = vsel %vm370, %v614, %v616
      %v618 = vsel %vm370, %v616, %v614
      %v619 = vmul.f32 %v617, %v255
      %v620 = vmul.f32 %v618, %v256
      %621 = vst [vmem:[#allocation2 + $0x60] sm:$0xff] %v619
      %622 = vst [vmem:[#allocation2 + $0x68] sm:$0xff] %v620
      %623 = vrot.lane.b32.xlu0 %v583, 16
      %v624 = vpop.permute.xlu0 %623
      %625 = vrot.lane.b32.xlu0 %v584, 16
      %v626 = vpop.permute.xlu0 %625
      %v627 = vsel %vm357, %v624, %v626
      %v628 = vsel %vm357, %v626, %v624
      %v629 = vmul.f32 %v628, %v253
      %v630 = vmul.f32 %v627, %v254
      %631 = vst [vmem:[#allocation2 + $0x10] sm:$0xff] %v629
      %632 = vst [vmem:[#allocation2 + $0x18] sm:$0xff] %v630
      %633 = vst [vmem:[#allocation2 + $0x40] sm:$0xff] %v583
      %634 = vst [vmem:[#allocation2 + $0x48] sm:$0xff] %v584
      %635 = vrot.lane.b32.xlu0 %v583, 112
      %v636 = vpop.permute.xlu0 %635
      %637 = vrot.lane.b32.xlu0 %v584, 112
      %v638 = vpop.permute.xlu0 %637
      %v639 = vsel %vm370, %v636, %v638
      %v640 = vsel %vm370, %v638, %v636
      %v641 = vmul.f32 %v639, %v255
      %v642 = vmul.f32 %v640, %v256
      %643 = vst [vmem:[#allocation2 + $0x70] sm:$0xff] %v641
      %644 = vst [vmem:[#allocation2 + $0x78] sm:$0xff] %v642
      %645 = vrot.lane.b32.xlu0 %v599, 16
      %v646 = vpop.permute.xlu0 %645
      %647 = vrot.lane.b32.xlu0 %v600, 16
      %v648 = vpop.permute.xlu0 %647
      %v649 = vsel %vm357, %v646, %v648
      %v650 = vsel %vm357, %v648, %v646
      %v651 = vmul.f32 %v650, %v253
      %v652 = vmul.f32 %v649, %v254
      %653 = vst [vmem:[#allocation2 + $0x20] sm:$0xff] %v651
      %654 = vst [vmem:[#allocation2 + $0x28] sm:$0xff] %v652
      %655 = vst [vmem:[#allocation2 + $0x50] sm:$0xff] %v599
      %656 = vst [vmem:[#allocation2 + $0x58] sm:$0xff] %v600
      %657 = vrot.lane.b32.xlu0 %v599, 112
      %v658 = vpop.permute.xlu0 %657
      %659 = vrot.lane.b32.xlu0 %v600, 112
      %v660 = vpop.permute.xlu0 %659
      %v661 = vsel %vm370, %v658, %v660
      %v662 = vsel %vm370, %v660, %v658
      %v663 = vmul.f32 %v661, %v255
      %v664 = vmul.f32 %v662, %v256
      %665 = vst [vmem:[#allocation2 + $0x80] sm:$0xff] %v663
      %666 = vst [vmem:[#allocation2 + $0x88] sm:$0xff] %v664
      %v667 = vld [vmem:[%s3] sm:$0xf]
      %v668 = vld [vmem:[%s3 + $0x4] sm:$0xf]
      %v669 = vld [vmem:[#allocation2] sm:$0xff]
      %v670 = vld [vmem:[#allocation2 + $0x8] sm:$0xff]
      %v671 = vld [vmem:[#allocation2 + $0x10] sm:$0xff]
      %v672 = vld [vmem:[#allocation2 + $0x18] sm:$0xff]
      %v673 = vld [vmem:[#allocation2 + $0x20] sm:$0xff]
      %v674 = vld [vmem:[#allocation2 + $0x28] sm:$0xff]
      %v675 = vld [vmem:[#allocation2 + $0x30] sm:$0xff]
      %v676 = vld [vmem:[#allocation2 + $0x38] sm:$0xff]
      %v677 = vld [vmem:[#allocation2 + $0x40] sm:$0xff]
      %v678 = vld [vmem:[#allocation2 + $0x48] sm:$0xff]
      %v679 = vld [vmem:[#allocation2 + $0x50] sm:$0xff]
      %v680 = vld [vmem:[#allocation2 + $0x58] sm:$0xff]
      %v681 = vld [vmem:[#allocation2 + $0x60] sm:$0xff]
      %v682 = vld [vmem:[#allocation2 + $0x68] sm:$0xff]
      %v683 = vld [vmem:[#allocation2 + $0x70] sm:$0xff]
      %v684 = vld [vmem:[#allocation2 + $0x78] sm:$0xff]
      %v685 = vld [vmem:[#allocation2 + $0x80] sm:$0xff]
      %v686 = vld [vmem:[#allocation2 + $0x88] sm:$0xff]
      %v687 = vpack.c.bf16 %v671, %v669
      %v688 = vpack.c.bf16 %v672, %v670
      %v689 = vpack.c.bf16 %v675, %v673
      %v690 = vpack.c.bf16 %v676, %v674
      %v691 = vpack.c.bf16 %v679, %v677
      %v692 = vpack.c.bf16 %v680, %v678
      %v693 = vpack.c.bf16 %v683, %v681
      %v694 = vpack.c.bf16 %v684, %v682
      %v695 = vpack.c.bf16 %v685, %v685
      %v696 = vpack.c.bf16 %v686, %v686
      %v699 = vunpack.c.l.b16 %v667
      %v700 = vunpack.c.l.b16 %v668
      %v701 = vpack.c.b16 %v700, %v699
      %v703 = vsel %vm466, %v701, 0
      %v706 = vsel %vm470, %v695, 0
      %v709 = vsel %vm470, %v696, 0
      %711 = vmatprep.subr.bf16.mxu0 0
      %712 = vmatpush1.bf16.msra.mxu0 0
      %713 = vmatprep.subr.bf16.mxu0 0
      %714 = vmatpush1.bf16.msra.mxu0 0
      %715 = vmatprep.subr.bf16.mxu0 0
      %716 = vmatpush1.bf16.msra.mxu0 0
      %717 = vmatprep.subr.bf16.mxu0 %v709
      %718 = vmatpush1.bf16.msra.mxu0 %v706
      %719 = vmatprep.subr.bf16.mxu0 %v694
      %720 = vmatpush1.bf16.msra.mxu0 %v693
      %721 = vmatprep.subr.bf16.mxu0 %v692
      %722 = vmatpush1.bf16.msra.mxu0 %v691
      %723 = vmatprep.subr.bf16.mxu0 %v690
      %724 = vmatpush1.bf16.msra.mxu0 %v689
      %725 = vmatprep.subr.bf16.mxu0 %v688
      %726 = vmatpush1.bf16.msra.mxu0 %v687
      %727 = vmatprep.subr.bf16.mxu0 0
      %728 = vmatpush2.bf16.msra.mxu0 0
      %729 = vmatprep.subr.bf16.mxu0 0
      %730 = vmatpush2.bf16.msra.mxu0 0
      %731 = vmatprep.subr.bf16.mxu0 0
      %732 = vmatpush2.bf16.msra.mxu0 0
      %733 = vmatprep.subr.bf16.mxu0 0
      %734 = vmatpush2.bf16.msra.mxu0 0
      %735 = vmatprep.subr.bf16.mxu0 0
      %736 = vmatpush2.bf16.msra.mxu0 0
      %737 = vmatprep.subr.bf16.mxu0 0
      %738 = vmatpush2.bf16.msra.mxu0 0
      %739 = vmatprep.subr.bf16.mxu0 0
      %740 = vmatpush2.bf16.msra.mxu0 0
      %741 = vmatprep.subr.bf16.mxu0 0
      %742 = vmatpush2.bf16.msra.mxu0 0
      %743 = vmatprep.mubr.bf16.mxu0 0
      %744 = vmatmul.mubr.bf16.gmra.mxu0 %v703
      %v745 = vpop.f32.mrf.mxu0
      %v746 = vadd.f32 %v454, %v745
      %v747 = vpop.f32.mrf.mxu0
      %v748 = vadd.f32 %v454, %v747
      %v749 = vpop.f32.mrf.mxu0
      %v750 = vadd.f32 %v459, %v749
      %v751 = vpop.f32.mrf.mxu0
      %v752 = vadd.f32 %v459, %v751
      %753 = vdwg.mxu0
      %v754 = vmul.f32 %v746, 0.2
      %v755 = vmul.f32 %v748, 0.2
      %v756 = vmul.f32 %v750, 0.2
      %v757 = vmul.f32 %v752, 0.2
      %v758 = vmax.f32 %v746, %v754
      %v759 = vmax.f32 %v748, %v755
      %v760 = vmax.f32 %v750, %v756
      %v761 = vmax.f32 %v752, %v757
      %762 = vst [vmem:[%s251] sm:$0xff] %v758
      %763 = vst [vmem:[%s251 + $0x8] sm:$0xff] %v759
      %764 = vst [vmem:[%s251 + $0x10] sm:$0xff] %v760
      %765 = vst [vmem:[%s251 + $0x18] sm:$0xff] %v761
      %p766 = scmp.lt.s32.totalorder %s17, 1
      %s767 = scalar_select %p766, %s17, 1
      %s768 = smul.addr %s767, 4
      %s769 = smul.addr %s768, 8
      %s770 = scalar_lea.vmem %s6, %s769
      // Predicated region
      $region45: #{upsample_forward.1} parent=43 // pred_check
        %p771 = pneg %p166
      $region46: #{upsample_forward.1} parent=43 // pred_check_branch
        %773 = sbr.rel (%p771) target = $region48
      $region47: #{upsample_forward.1} parent=43 // pred_region
        _
      $region48: #{upsample_forward.1} parent=43 // pred_fallthru
        _
    $region44: #{upsample_forward.1} parent=5 // pred_fallthru
      _
    %p774 = scmp.le.s32.totalorder 2, %s12
    // Predicated region
    $region49: #{upsample_forward.1} parent=5 // pred_check
      %p775 = pneg %p774
    $region50: #{upsample_forward.1} parent=5 // pred_check_branch
      %777 = sbr.rel (%p775) target = $region52
    $region51: #{upsample_forward.1} parent=5 // pred_region
      %s778 = ssub.s32 %s12, 2
      // Predicated region
      $region53: #{upsample_forward.1} parent=51 // pred_check
        %p779 = pneg %p172
      $region54: #{upsample_forward.1} parent=51 // pred_check_branch
        %781 = sbr.rel (%p779) target = $region56
      $region55: #{upsample_forward.1} parent=51 // pred_region
        %p782 = scmp.lt.s32.totalorder %s18, 1
        %s783 = scalar_select %p782, %s18, 1
        %s784 = smul.addr %s783, 4
        %s785 = smul.addr %s784, 8
        %s786 = scalar_lea.vmem %s6, %s785
      $region56: #{upsample_forward.1} parent=51 // pred_fallthru
        _
    $region52: #{upsample_forward.1} parent=5 // pred_fallthru
      _
  $region6: #{upsample_forward.1} parent=0 // loop_footer
    %s16 = sadd.s32 1, %s12
  $region7: #{upsample_forward.1} parent=0 // loop_footer_branch
    %11 = sbr.rel target = $region3
  $region8: #{upsample_forward.1} parent=0 // loop_exit
    _

</llo_original>
